<compile_context>
chip_gen: v7x
topology: tpu7x:2x2x1
jax: 0.10.0
libtpu: 0.0.40
codegen_flags: <defaults>
</compile_context>

<pallas_src>
import functools

import jax
import jax.numpy as jnp
from jax import lax
from jax.experimental import pallas as pl
from jax.experimental.pallas import tpu as pltpu


# ---------------------------------------------------------------------------
# VMEM budgeting (generation-aware: 128 MiB on v5e/v6e, 64 MiB on v7x).
# ---------------------------------------------------------------------------
def _vmem_limits():
    cap = 64 << 20  # conservative fallback (v7x physical VMEM per TC)
    try:
        info = pltpu.get_tpu_info()
        cap = int(getattr(info, "vmem_capacity_bytes", cap))
    except Exception:
        pass
    # Scoped limit we request from the compiler, with headroom below physical.
    limit = min((cap * 3) // 4, 96 << 20)
    # Fraction of that limit we allow our own (double-buffered) tiles to use.
    budget = (limit * 3) // 4
    return limit, budget


def _round_up(x, m):
    return ((x + m - 1) // m) * m


_MAX_TK = 8192  # diminishing returns beyond this; keeps DMAs reasonable


def _choose_tiles(M, K, elem_bytes, budget):
    """K-tile for the single-row-block (small/medium M) path."""
    k_aligned = _round_up(K, 128)
    fixed = 2 * M * M * 4                      # output block (f32), conservative x2
    avail = max(budget - fixed, 0)
    tk = (avail // (2 * M * elem_bytes)) // 128 * 128   # 2x double-buffered tiles
    tk = max(128, min(tk, _MAX_TK, k_aligned))
    k_padded = _round_up(K, tk)
    return tk, k_padded


def _choose_tiles_rowblock(M, tm, K, elem_bytes, budget):
    """K-tile for the row-block-parallel (large M) path."""
    k_aligned = _round_up(K, 128)
    fixed = 2 * tm * M * 4                     # output tile (f32), conservative x2
    avail = max(budget - fixed, 0)
    per_tk = 2 * (tm + M) * elem_bytes         # double-buffered lhs + rhs tiles
    tk = (avail // per_tk) // 128 * 128
    tk = max(128, min(tk, _MAX_TK, k_aligned))
    k_padded = _round_up(K, tk)
    return tk, k_padded


# ---------------------------------------------------------------------------
# Kernels
# ---------------------------------------------------------------------------
def _gram_kernel(f_ref, g_ref, *, inv_denom):
    """Single row block: accumulate f @ f.T directly into the resident output."""
    k = pl.program_id(0)

    @pl.when(k == 0)
    def _():
        g_ref[...] = jnp.zeros_like(g_ref)

    f = f_ref[...]
    g_ref[...] += lax.dot_general(
        f, f, (((1,), (1,)), ((), ())), preferred_element_type=jnp.float32)

    @pl.when(k == pl.num_programs(0) - 1)
    def _():
        g_ref[...] *= inv_denom


def _gram_rowblock_kernel(lhs_ref, rhs_ref, g_ref, *, inv_denom):
    """Row-block-parallel variant: output tile is (tm, M), grid = (rows, K)."""
    k = pl.program_id(1)

    @pl.when(k == 0)
    def _():
        g_ref[...] = jnp.zeros_like(g_ref)

    g_ref[...] += lax.dot_general(
        lhs_ref[...], rhs_ref[...], (((1,), (1,)), ((), ())),
        preferred_element_type=jnp.float32)

    @pl.when(k == pl.num_programs(1) - 1)
    def _():
        g_ref[...] *= inv_denom


def _mse_kernel(g_ref, t_ref, loss_ref):
    diff = g_ref[...] - t_ref[...].astype(jnp.float32)
    # nn.MSELoss(reduction='mean'): mean over all (a*b)^2 elements.
    loss_ref[...] = jnp.mean(diff * diff, keepdims=True)


# ---------------------------------------------------------------------------
# Wrappers
# ---------------------------------------------------------------------------
def gram_matrix(x, *, cast_to_bf16=False):
    """G = (features @ features.T) / (a*b*c*d), features = x.view(a*b, c*d)."""
    a, b, c, d = x.shape
    M, K = a * b, c * d
    features = x.reshape(M, K)
    if cast_to_bf16:
        # Halves HBM bytes of the dominant feature stream; MXU-native operands.
        features = features.astype(jnp.bfloat16)
    elem_bytes = jnp.dtype(features.dtype).itemsize
    limit, budget = _vmem_limits()
    inv_denom = 1.0 / float(a * b * c * d)

    use_rowblock = (M >= 512) and (M % 256 == 0)

    if not use_rowblock:
        tk, k_padded = _choose_tiles(M, K, elem_bytes, budget)
        if k_padded != K:
            features = jnp.pad(features, ((0, 0), (0, k_padded - K)))
        return pl.pallas_call(
            functools.partial(_gram_kernel, inv_denom=inv_denom),
            out_shape=jax.ShapeDtypeStruct((M, M), jnp.float32),
            grid_spec=pltpu.PrefetchScalarGridSpec(
                num_scalar_prefetch=0,
                grid=(k_padded // tk,),
                in_specs=[pl.BlockSpec((M, tk), lambda k: (0, k))],
                out_specs=pl.BlockSpec((M, M), lambda k: (0, 0)),
            ),
            compiler_params=pltpu.CompilerParams(
                dimension_semantics=("arbitrary",),
                vmem_limit_bytes=limit),
        )(features)

    # Large M: split Gram rows across a parallel grid axis (2 TCs on v7x).
    tm = 256
    tk, k_padded = _choose_tiles_rowblock(M, tm, K, elem_bytes, budget)
    if k_padded != K:
        features = jnp.pad(features, ((0, 0), (0, k_padded - K)))
    return pl.pallas_call(
        functools.partial(_gram_rowblock_kernel, inv_denom=inv_denom),
        out_shape=jax.ShapeDtypeStruct((M, M), jnp.float32),
        grid_spec=pltpu.PrefetchScalarGridSpec(
            num_scalar_prefetch=0,
            grid=(M // tm, k_padded // tk),
            in_specs=[pl.BlockSpec((tm, tk), lambda i, k: (i, k)),
                      pl.BlockSpec((M, tk), lambda i, k: (0, k))],
            out_specs=pl.BlockSpec((tm, M), lambda i, k: (i, 0)),
        ),
        compiler_params=pltpu.CompilerParams(
            dimension_semantics=("parallel", "arbitrary"),
            vmem_limit_bytes=limit),
    )(features, features)


def mse_loss(G, target_gram):
    """Mean squared error over the (M, M) Gram matrices (scalar)."""
    M = G.shape[0]
    loss = pl.pallas_call(
        _mse_kernel,
        out_shape=jax.ShapeDtypeStruct((1, 1), jnp.float32),
        grid_spec=pltpu.PrefetchScalarGridSpec(
            num_scalar_prefetch=0,
            grid=(1,),
            in_specs=[pl.BlockSpec((M, M), lambda i: (0, 0)),
                      pl.BlockSpec((M, M), lambda i: (0, 0))],
            out_specs=pl.BlockSpec((1, 1), lambda i: (0, 0)),
        ),
        compiler_params=pltpu.CompilerParams(
            dimension_semantics=("arbitrary",)),
    )(G, target_gram)
    return loss[0, 0]


def style_loss_forward(x, target_gram, *, cast_to_bf16=False):
    """Matches StyleLoss.forward: returns its input, stashes loss and G."""
    G = gram_matrix(x, cast_to_bf16=cast_to_bf16)
    loss = mse_loss(G, target_gram)
    return x, loss, G


class StyleLoss:
    """JAX/Pallas port of the PyTorch StyleLoss module."""

    def __init__(self, target, *, cast_to_bf16=False):
        # Target Gram precomputed once; stop_gradient mirrors .detach().
        self.target = lax.stop_gradient(gram_matrix(target))
        self._cast_to_bf16 = cast_to_bf16
        self.loss = None
        self.G = None

    def __call__(self, inputs):
        out, self.loss, self.G = style_loss_forward(
            inputs, self.target, cast_to_bf16=self._cast_to_bf16)
        return out


if __name__ == "__main__":
    key = jax.random.PRNGKey(0)
    k1, k2 = jax.random.split(key)
    # NCHW, small shapes consistent with the module's view(a*b, c*d).
    a, b, c, d = 2, 4, 16, 16
    target = jax.random.normal(k1, (a, b, c, d), dtype=jnp.float32)
    x = jax.random.normal(k2, (a, b, c, d), dtype=jnp.float32)

    module = StyleLoss(target)
    out = jax.block_until_ready(module(x))
    loss = jax.block_until_ready(module.loss)
    G = jax.block_until_ready(module.G)

    # Pure-JAX reference check of the hot-path math.
    def ref_gram(z):
        aa, bb, cc, dd = z.shape
        f = z.reshape(aa * bb, cc * dd).astype(jnp.float32)
        return (f @ f.T) / (aa * bb * cc * dd)

    G_ref = ref_gram(x)
    loss_ref = jnp.mean((G_ref - ref_gram(target)) ** 2)
    assert jnp.allclose(out, x)
    assert jnp.allclose(G, G_ref, rtol=1e-5, atol=1e-5)
    assert jnp.allclose(loss, loss_ref, rtol=1e-5, atol=1e-6)

    # Optional bf16-operand fast path (halves HBM traffic); looser tolerance.
    _, loss_bf16, G_bf16 = style_loss_forward(x, module.target, cast_to_bf16=True)
    G_bf16 = jax.block_until_ready(G_bf16)
    assert jnp.allclose(G_bf16, G_ref, rtol=2e-2, atol=2e-2)

    # Exercise the K % 128 != 0 path (zero-padded inside the wrapper).
    c2, d2 = 10, 13  # K = 130
    x2 = jax.random.normal(k2, (a, b, c2, d2), dtype=jnp.float32)
    G2 = jax.block_until_ready(gram_matrix(x2))
    assert jnp.allclose(G2, ref_gram(x2), rtol=1e-5, atol=1e-5)

    print("KERNEL_OK")
</pallas_src>

<mosaic_0001>
module attributes {stable_mosaic.version = 11 : i64} {
  func.func @_gram_kernel(%arg0: i32, %arg1: memref<8x256xf32, #tpu.memory_space<vmem>>, %arg2: memref<8x8xf32, #tpu.memory_space<vmem>>) attributes {dimension_semantics = [#tpu.dimension_semantics<arbitrary>], iteration_bounds = array<i64: 1>, scalar_prefetch = 0 : i64, scratch_operands = 0 : i64, tpu.core_type = #tpu.core_type<tc>, window_params = [{transform_indices = @transform_0, window_bounds = array<i64: 8, 256>}, {pipeline_mode = #tpu.pipeline_mode<synchronous>, transform_indices = @transform_1, window_bounds = array<i64: 8, 8>}]} {
    %c0_i32 = arith.constant 0 : i32
    %0 = arith.cmpi eq, %arg0, %c0_i32 : i32
    %1 = arith.extui %0 : i1 to i32
    %c0_i32_0 = arith.constant 0 : i32
    %2 = arith.cmpi ne, %1, %c0_i32_0 : i32
    scf.if %2 {
      %cst_8 = arith.constant 0.000000e+00 : f32
      %11 = vector.broadcast %cst_8 : f32 to vector<8x8xf32>
      %c0_9 = arith.constant 0 : index
      %c0_10 = arith.constant 0 : index
      %12 = vector.load %arg2[%c0_9, %c0_10] : memref<8x8xf32, #tpu.memory_space<vmem>>, vector<8x8xf32>
      tpu.vector_store %arg2[%c0_9, %c0_10], %11 {strides = array<i32>} : memref<8x8xf32, #tpu.memory_space<vmem>>, vector<8x8xf32>,
    } else {
    }
    %c0 = arith.constant 0 : index
    %c0_1 = arith.constant 0 : index
    %3 = vector.load %arg1[%c0, %c0_1] : memref<8x256xf32, #tpu.memory_space<vmem>>, vector<8x256xf32>
    %c0_2 = arith.constant 0 : index
    %c0_3 = arith.constant 0 : index
    %4 = vector.load %arg2[%c0_2, %c0_3] : memref<8x8xf32, #tpu.memory_space<vmem>>, vector<8x8xf32>
    %cst = arith.constant dense<0.000000e+00> : vector<8x8xf32>
    %5 = tpu.matmul %3, %3, %cst {dimension_numbers = #tpu.dot_dimension_numbers<[1], [1], [0], [0], [0, 0, 1, 0], [], []>} : vector<8x256xf32>, vector<8x256xf32>, vector<8x8xf32> -> vector<8x8xf32>
    %6 = arith.addf %4, %5 : vector<8x8xf32>
    %c0_4 = arith.constant 0 : index
    %c0_5 = arith.constant 0 : index
    %7 = vector.load %arg2[%c0_4, %c0_5] : memref<8x8xf32, #tpu.memory_space<vmem>>, vector<8x8xf32>
    tpu.vector_store %arg2[%c0_4, %c0_5], %6 {strides = array<i32>} : memref<8x8xf32, #tpu.memory_space<vmem>>, vector<8x8xf32>,
    %c0_i32_6 = arith.constant 0 : i32
    %8 = arith.cmpi eq, %arg0, %c0_i32_6 : i32
    %9 = arith.extui %8 : i1 to i32
    %c0_i32_7 = arith.constant 0 : i32
    %10 = arith.cmpi ne, %9, %c0_i32_7 : i32
    scf.if %10 {
      %c0_8 = arith.constant 0 : index
      %c0_9 = arith.constant 0 : index
      %11 = vector.load %arg2[%c0_8, %c0_9] : memref<8x8xf32, #tpu.memory_space<vmem>>, vector<8x8xf32>
      %cst_10 = arith.constant 4.8828125E-4 : f32
      %12 = vector.broadcast %cst_10 : f32 to vector<8x8xf32>
      %13 = arith.mulf %11, %12 : vector<8x8xf32>
      %c0_11 = arith.constant 0 : index
      %c0_12 = arith.constant 0 : index
      %14 = vector.load %arg2[%c0_11, %c0_12] : memref<8x8xf32, #tpu.memory_space<vmem>>, vector<8x8xf32>
      tpu.vector_store %arg2[%c0_11, %c0_12], %13 {strides = array<i32>} : memref<8x8xf32, #tpu.memory_space<vmem>>, vector<8x8xf32>,
    } else {
    }
    return
  }
  func.func @transform_0(%arg0: i32) -> (i32, i32) {
    %c0_i32 = arith.constant 0 : i32
    %c0_i32_0 = arith.constant 0 : i32
    return %c0_i32, %arg0 : i32, i32
  }
  func.func @transform_1(%arg0: i32) -> (i32, i32) {
    %c0_i32 = arith.constant 0 : i32
    %c0_i32_0 = arith.constant 0 : i32
    %c0_i32_1 = arith.constant 0 : i32
    return %c0_i32, %c0_i32_0 : i32, i32
  }
}

</mosaic_0001>

<llo_original>
// kernel: tpu_custom_call.1
$region0: #{tpu_custom_call.1}
  #allocation0 [shape = 'u32[]', space=smem, size = 0x4, offset = 0x4, fixed_abs, tag = 'smem constant byte address 0x4 - core index']
  #allocation1 [shape = 'u32[144,128]{1,0:T(1,128)}', space=vmem, size = 0x12000, scoped, tag = 'internal scratch']
  %s0 = inlined_call_operand.hbm [shape: f32[8,256], index: 0, kind: input, shape index: {}]
  %s1 = inlined_call_operand.hbm [shape: f32[8,8], index: 1, kind: output, shape index: {}]
  %s2 = sld [smem:[#allocation0]]
  $region26: #{tpu_custom_call.1} parent=0
    _
  %s4 = ssub.s32 1, %s2
  %s5 = scalar_select 0, %s4, %s2
  $region1: #{tpu_custom_call.1} parent=0
    #allocation2 [shape = 'u8[8192]{0}', space=vmem, size = 0x2000, scoped, tag = 'input window, operand 0, single buffered']
    #allocation3 [shape = 's32[1]{0}', space=sflag, size = 0x4, scoped, tag = 'scoped memory for tpu_custom_call.1']
    #allocation4 [shape = 's32[1]{0}', space=sflag, size = 0x4, scoped, tag = 'scoped memory for tpu_custom_call.1']
    #allocation5 [shape = 'u8[4096]{0}', space=vmem, size = 0x1000, scoped, tag = 'output window, operand 0, single buffered']
    %6 = vsyncpa [#allocation3], 0
    %7 = vsyncpa [#allocation4], 0
    // Predicated region
    $region2: #{tpu_custom_call.1} parent=1 // pred_check
      _
    $region3: #{tpu_custom_call.1} parent=1 // pred_check_branch
      %9 = sbr.rel (0) target = $region5
    $region4: #{tpu_custom_call.1} parent=1 // pred_region
      %s11 = ssub.s32 256, 256
      %12 = vsyncadd [#allocation3], %s11
      %s14 = sshll.u32 [#allocation2], 4
      %s15 = int_to_ptr.vmem [resolvable:$true] %s14
      %17 = dma.hbm_to_vmem [thread:$0]  %s0, 256, %s15, [#allocation3]
    $region5: #{tpu_custom_call.1} parent=1 // pred_fallthru
      _
    // Predicated region
    $region6: #{tpu_custom_call.1} parent=1 // pred_check
      _
    $region7: #{tpu_custom_call.1} parent=1 // pred_check_branch
      %19 = sbr.rel (0) target = $region9
    $region8: #{tpu_custom_call.1} parent=1 // pred_region
      %20 = dma.done [#allocation3], 256
    $region9: #{tpu_custom_call.1} parent=1 // pred_fallthru
      _
    %p21 = scmp.eq.s32.totalorder 0, 0
    // Predicated region
    $region10: #{tpu_custom_call.1} parent=1 // pred_check
      %p22 = pneg %p21
    $region11: #{tpu_custom_call.1} parent=1 // pred_check_branch
      %24 = sbr.rel (%p22) target = $region13
    $region12: #{tpu_custom_call.1} parent=1 // pred_region
      %vm25 = vcmask 64512
      %26 = vst.msk [vmem:[#allocation5] sm:$0xff] %vm25, 0.0
    $region13: #{tpu_custom_call.1} parent=1 // pred_fallthru
      _
    %v27 = vld [vmem:[#allocation2] sm:$0xff]
    %v28 = vld [vmem:[#allocation2 + $0x8] sm:$0xff]
    %v29 = vld [vmem:[#allocation5] sm:$0xff]
    %30 = vmatprep.subr.mxu0 %v28
    %31 = vmatpush1.xpose.msra.mxu0 %v27
    %32 = vmatprep.subr.mxu0 0.0
    %33 = vmatpush1.xpose.msra.mxu0 0.0
    %34 = vmatprep.subr.mxu0 0.0
    %35 = vmatpush1.xpose.msra.mxu0 0.0
    %36 = vmatprep.subr.mxu0 0.0
    %37 = vmatpush1.xpose.msra.mxu0 0.0
    %38 = vmatprep.subr.mxu0 0.0
    %39 = vmatpush1.xpose.msra.mxu0 0.0
    %40 = vmatprep.subr.mxu0 0.0
    %41 = vmatpush1.xpose.msra.mxu0 0.0
    %42 = vmatprep.subr.mxu0 0.0
    %43 = vmatpush1.xpose.msra.mxu0 0.0
    %44 = vmatprep.subr.mxu0 0.0
    %45 = vmatpush1.xpose.msra.mxu0 0.0
    %46 = vmatprep.subr.mxu0 0.0
    %47 = vmatpush1.xpose.msra.mxu0 0.0
    %48 = vmatprep.subr.mxu0 0.0
    %49 = vmatpush1.xpose.msra.mxu0 0.0
    %50 = vmatprep.subr.mxu0 0.0
    %51 = vmatpush1.xpose.msra.mxu0 0.0
    %52 = vmatprep.subr.mxu0 0.0
    %53 = vmatpush1.xpose.msra.mxu0 0.0
    %54 = vmatprep.subr.mxu0 0.0
    %55 = vmatpush1.xpose.msra.mxu0 0.0
    %56 = vmatprep.subr.mxu0 0.0
    %57 = vmatpush1.xpose.msra.mxu0 0.0
    %58 = vmatprep.subr.mxu0 0.0
    %59 = vmatpush1.xpose.msra.mxu0 0.0
    %60 = vmatprep.subr.mxu0 0.0
    %61 = vmatpush1.xpose.msra.mxu0 0.0
    %62 = vmatprep.subr.mxu0 0.0
    %63 = vmatpush1.xpose.msra.mxu0 0.0
    %64 = vmatprep.subr.mxu0 0.0
    %65 = vmatpush1.xpose.msra.mxu0 0.0
    %66 = vmatprep.subr.mxu0 0.0
    %67 = vmatpush1.xpose.msra.mxu0 0.0
    %68 = vmatprep.subr.mxu0 0.0
    %69 = vmatpush1.xpose.msra.mxu0 0.0
    %70 = vmatprep.subr.mxu0 0.0
    %71 = vmatpush1.xpose.msra.mxu0 0.0
    %72 = vmatprep.subr.mxu0 0.0
    %73 = vmatpush1.xpose.msra.mxu0 0.0
    %74 = vmatprep.subr.mxu0 0.0
    %75 = vmatpush1.xpose.msra.mxu0 0.0
    %76 = vmatprep.subr.mxu0 0.0
    %77 = vmatpush1.xpose.msra.mxu0 0.0
    %78 = vmatprep.subr.mxu0 0.0
    %79 = vmatpush1.xpose.msra.mxu0 0.0
    %80 = vmatprep.subr.mxu0 0.0
    %81 = vmatpush1.xpose.msra.mxu0 0.0
    %82 = vmatprep.subr.mxu0 0.0
    %83 = vmatpush1.xpose.msra.mxu0 0.0
    %84 = vmatprep.subr.mxu0 0.0
    %85 = vmatpush1.xpose.msra.mxu0 0.0
    %86 = vmatprep.subr.mxu0 0.0
    %87 = vmatpush1.xpose.msra.mxu0 0.0
    %88 = vmatprep.subr.mxu0 0.0
    %89 = vmatpush1.xpose.msra.mxu0 0.0
    %90 = vmatprep.subr.mxu0 0.0
    %91 = vmatpush1.xpose.msra.mxu0 0.0
    %92 = vmatprep.subr.mxu0 0.0
    %93 = vmatpush1.xpose.msra.mxu0 0.0
    %94 = vmatprep.mubr.f32.mxu0 %v28
    %95 = vmatmul.mubr.f32.gmra.mrb[0].mxu0 %v27
    %v96 = vpop.f32.mrb[0].mxu0
    %v97 = vadd.f32 0.0, %v96
    %v98 = vpop.f32.mrb[0].mxu0
    %99 = vdwg.mxu0
    %v100 = vadd.f32 %v29, %v97
    %vm101 = vcmask 64512
    %102 = vst.msk [vmem:[#allocation5] sm:$0xff] %vm101, %v100
    // Predicated region
    $region14: #{tpu_custom_call.1} parent=1 // pred_check
      %p103 = pneg %p21
    $region15: #{tpu_custom_call.1} parent=1 // pred_check_branch
      %105 = sbr.rel (%p103) target = $region17
    $region16: #{tpu_custom_call.1} parent=1 // pred_region
      %v106 = vld [vmem:[#allocation5] sm:$0xff]
      %v107 = vmul.f32 %v106, 0.00048828125
      %108 = vst.msk [vmem:[#allocation5] sm:$0xff] %vm101, %v107
    $region17: #{tpu_custom_call.1} parent=1 // pred_fallthru
      _
    // Predicated region
    $region18: #{tpu_custom_call.1} parent=1 // pred_check
      _
    $region19: #{tpu_custom_call.1} parent=1 // pred_check_branch
      %110 = sbr.rel (0) target = $region21
    $region20: #{tpu_custom_call.1} parent=1 // pred_region
      %s112 = ssub.s32 128, 128
      %113 = vsyncadd [#allocation4], %s112
      %s115 = sshll.u32 [#allocation5], 4
      %s116 = int_to_ptr.vmem [resolvable:$true] %s115
      %118 = dma.vmem_to_hbm [thread:$0]  %s116, 128, %s1, [#allocation4]
    $region21: #{tpu_custom_call.1} parent=1 // pred_fallthru
      _
    // Predicated region
    $region22: #{tpu_custom_call.1} parent=1 // pred_check
      _
    $region23: #{tpu_custom_call.1} parent=1 // pred_check_branch
      %120 = sbr.rel (0) target = $region25
    $region24: #{tpu_custom_call.1} parent=1 // pred_region
      %121 = dma.done [#allocation4], 128
    $region25: #{tpu_custom_call.1} parent=1 // pred_fallthru
      _
    %122 = vsyncpa [#allocation3], 1
    %123 = vsyncpa [#allocation4], 1

</llo_original>
